<compile_context>
chip_gen: v6e
topology: v6e:2x2x1
jax: 0.10.0
libtpu: 0.0.40
codegen_flags: <defaults>
</compile_context>

<pallas_src>
import functools

import jax
import jax.numpy as jnp
from jax.experimental import pallas as pl
from jax.experimental.pallas import tpu as pltpu


def _round_up(x, m):
    return ((x + m - 1) // m) * m


# ----------------------------------------------------------------------------
# Fused per-layer kernel: per-edge attention weights + MXU one-hot scatter-add
# ----------------------------------------------------------------------------
def _gat_scatter_kernel(first_ref, count_ref, rows_ref, proj_ref, sel_ref,
                        out_ref, acc_ref, *, n_heads, d_head, alpha, apply_elu):
    """grid = (node_tiles, edge_blocks_per_node_tile).

    first_ref/count_ref : SMEM scalar prefetch; per node tile: first edge block and
                          number of edge blocks holding its (row-sorted) edges.
    rows_ref  : (1, E_TILE)      int32  scatter row (edge[0]), sorted; pad = n_pad
    proj_ref  : (E_TILE, W_pad)  bf16   per-edge projection [edge_m heads | powers | 0]
    sel_ref   : (n_sel, W_pad)   bf16   head -> (head lanes + rowsum lane) broadcast
    out_ref   : (N_TILE, W_pad)  bf16   h_prime in [:, :H*D]
    acc_ref   : (N_TILE, W_pad)  f32    scratch accumulator (persists over k)
    """
    i = pl.program_id(0)                       # node tile   ("parallel")
    k = pl.program_id(1)                       # edge block  (reduction, "arbitrary")
    dh = n_heads * d_head
    n_tile = out_ref.shape[0]
    e_tile = rows_ref.shape[1]

    @pl.when(k == 0)
    def _init():
        acc_ref[...] = jnp.zeros_like(acc_ref)

    # Only count_ref[i] edge blocks actually contain edges of this node tile; the
    # index_map clamps larger k to a valid block and this guard skips the work.
    @pl.when(k < count_ref[i])
    def _accumulate():
        projv = proj_ref[...]                                   # (E_TILE, W_pad) bf16
        # --- per-edge attention weights, vectorized over heads ---
        p = projv[:, dh:dh + n_heads].astype(jnp.float32)       # powers (E_TILE, H)
        lrelu = jnp.where(p > 0, p, alpha * p)
        e = jnp.exp(jnp.minimum(-lrelu, 60.0))                  # f32; overflow guard
        pad_h = sel_ref.shape[0] - n_heads                      # static
        if pad_h > 0:                                           # pad K of the tiny
            e = jnp.concatenate(                                # broadcast matmul to 8
                [e, jnp.zeros((e_tile, pad_h), e.dtype)], axis=1)
        # broadcast e_h onto head-h's d_head lanes and the rowsum lane dh+h (MXU)
        e_wide = jnp.dot(e.astype(jnp.bfloat16), sel_ref[...],
                         preferred_element_type=jnp.float32)    # (E_TILE, W_pad) f32
        lane = jax.lax.broadcasted_iota(jnp.int32, projv.shape, 1)
        is_pow = (lane >= dh) & (lane < dh + n_heads)
        base = jnp.where(is_pow, 1.0, projv)                    # power lanes -> 1
        edge_w = (e_wide * base.astype(jnp.float32)).astype(jnp.bfloat16)
        # --- one-hot scatter-add on the MXU; tile offset applied to the small rows
        #     vector instead of the (N_TILE, E_TILE) iota ---
        local = rows_ref[...] - i * n_tile                      # (1, E_TILE) int32
        node_iota = jax.lax.broadcasted_iota(jnp.int32, (n_tile, e_tile), 0)
        onehot = (node_iota == local).astype(jnp.bfloat16)      # exact in bf16
        acc_ref[...] += jnp.dot(onehot, edge_w,
                                preferred_element_type=jnp.float32)

    @pl.when(k == pl.num_programs(1) - 1)
    def _finalize():                                            # cold path, once/tile
        acc = acc_ref[...]
        outs = []
        for h in range(n_heads):                                # tiny static unroll
            rs = acc[:, dh + h:dh + h + 1]                      # e_rowsum (N_TILE, 1)
            rs = jnp.where(rs == 0.0, 1e-12, rs)                # matches torch clamp
            outs.append(acc[:, h * d_head:(h + 1) * d_head] / rs)
        hp = jnp.concatenate(outs, axis=1)                      # (N_TILE, DH) f32
        if apply_elu:                                           # concat=True layers
            hp = jnp.where(hp > 0, hp, jnp.exp(hp) - 1.0)
        pad_w = out_ref.shape[1] - dh
        if pad_w > 0:
            hp = jnp.concatenate(
                [hp, jnp.zeros((n_tile, pad_w), jnp.float32)], axis=1)
        out_ref[...] = hp.astype(out_ref.dtype)                 # bf16 writeback


# ----------------------------------------------------------------------------
# Layer wrapper: linearity, sort, segment ranges, pallas_call
# ----------------------------------------------------------------------------
def gat_layer(x, rows, cols, rel_edge, a_list, a2_list, *, alpha, apply_elu,
              n_tile=512, e_tile=2048):
    """One (multi-head) SpGraphAttentionLayer forward.

    x        : (N, Fin)   node features
    rows     : (E,)       scatter destination (edge[0])
    cols     : (E,)       source node (edge[1])
    rel_edge : (E, Rdim)  per-edge relation features
    a_list   : H tensors (D, 2*Fin + Rdim);  a2_list : H tensors (1, D)
    returns  : (N, H*D) bf16

    NOTE: this wrapper is meant to run eagerly (the pallas_call itself is compiled);
    the per-node-tile edge-block count needs a concrete value for the grid.
    """
    n_nodes, f_in = x.shape
    n_edges, _ = rel_edge.shape
    n_heads = len(a_list)
    d_head = a_list[0].shape[0]
    dh = n_heads * d_head
    w_pad = _round_up(dh + n_heads, 128)       # lane-dense output width

    n_tile = min(n_tile, _round_up(n_nodes, 8))
    n_pad = _round_up(n_nodes, n_tile)
    n_blocks_n = n_pad // n_tile
    e_tile = min(e_tile, _round_up(n_edges, 128))
    e_pad = _round_up(n_edges, e_tile)
    n_blocks_e = e_pad // e_tile

    # Augmented projection [a_1^T .. a_H^T | a_h^T a2_h^T .. | 0], split by linearity.
    at = [jnp.transpose(a).astype(jnp.float32) for a in a_list]           # (2F+R, D)
    pc = [m @ a2.reshape(d_head, 1).astype(jnp.float32)
          for m, a2 in zip(at, a2_list)]                                   # (2F+R, 1)
    a_full = jnp.concatenate(at + pc, axis=1)                              # (2F+R, DH+H)
    a_full = jnp.pad(a_full, ((0, 0), (0, w_pad - (dh + n_heads))))
    a_full = a_full.astype(jnp.bfloat16)
    a_src = a_full[:f_in]
    a_dst = a_full[f_in:2 * f_in]
    a_rel = a_full[2 * f_in:]

    # Small XLA GEMMs + gathers replace the old in-kernel E x F x W projection;
    # the O(E x F) edge_h slab never exists.
    xb = x.astype(jnp.bfloat16)
    src_p = jnp.dot(xb, a_src, preferred_element_type=jnp.float32)         # (N, Wp)
    dst_p = jnp.dot(xb, a_dst, preferred_element_type=jnp.float32)         # (N, Wp)
    rel_p = jnp.dot(rel_edge.astype(jnp.bfloat16), a_rel,
                    preferred_element_type=jnp.float32)                    # (E, Wp)

    # Sort edges by destination row (CSR-style) so each edge block only feeds the
    # node tile(s) it scatters into.
    rows = rows.astype(jnp.int32)
    cols = cols.astype(jnp.int32)
    order = jnp.argsort(rows)
    rows_s = rows[order]
    edge_proj = (src_p[rows_s] + dst_p[cols[order]]
                 + rel_p[order]).astype(jnp.bfloat16)                      # (E, Wp)

    edge_proj = jnp.pad(edge_proj, ((0, e_pad - n_edges), (0, 0)))
    rows_p = jnp.pad(rows_s, (0, e_pad - n_edges),
                     constant_values=n_pad).reshape(1, e_pad)              # sentinel

    # Per-node-tile edge-block ranges for scalar prefetch:
    # node tile i touches edge blocks [first[i], first[i] + count[i]).
    bounds = jnp.arange(n_blocks_n + 1, dtype=jnp.int32) * n_tile
    seg = jnp.searchsorted(rows_s, bounds, side="left").astype(jnp.int32)
    start, end = seg[:-1], seg[1:]
    first = jnp.clip(start // e_tile, 0, n_blocks_e - 1).astype(jnp.int32)
    last = jnp.where(end > start, (end - 1) // e_tile, first)
    count = jnp.where(end > start, last - first + 1, 0).astype(jnp.int32)
    kmax = max(int(jnp.max(count)), 1)          # concrete -> eager wrapper

    # Constant head-broadcast matrix: row h has ones on head-h's d_head lanes and on
    # the rowsum lane dh+h; padded to 8 rows (zero) so the broadcast matmul has K=8.
    n_sel = max(n_heads, 8)
    lane = jnp.arange(w_pad, dtype=jnp.int32)[None, :]
    head = jnp.arange(n_sel, dtype=jnp.int32)[:, None]
    sel = ((((lane >= head * d_head) & (lane < (head + 1) * d_head))
            | (lane == dh + head)) & (head < n_heads)).astype(jnp.bfloat16)

    def edge_block(i, k, first_ref, count_ref):
        b = first_ref[i] + jnp.minimum(k, jnp.maximum(count_ref[i] - 1, 0))
        return jnp.minimum(b, n_blocks_e - 1)

    kernel = functools.partial(_gat_scatter_kernel, n_heads=n_heads,
                               d_head=d_head, alpha=alpha, apply_elu=apply_elu)
    out = pl.pallas_call(
        kernel,
        out_shape=jax.ShapeDtypeStruct((n_pad, w_pad), jnp.bfloat16),
        grid_spec=pltpu.PrefetchScalarGridSpec(
            num_scalar_prefetch=2,
            grid=(n_blocks_n, kmax),
            in_specs=[
                pl.BlockSpec((1, e_tile),
                             lambda i, k, f, c: (0, edge_block(i, k, f, c))),
                pl.BlockSpec((e_tile, w_pad),
                             lambda i, k, f, c: (edge_block(i, k, f, c), 0)),
                pl.BlockSpec((n_sel, w_pad), lambda i, k, f, c: (0, 0)),
            ],
            out_specs=pl.BlockSpec((n_tile, w_pad), lambda i, k, f, c: (i, 0)),
            scratch_shapes=[pltpu.VMEM((n_tile, w_pad), jnp.float32)],
        ),
        compiler_params=pltpu.CompilerParams(
            # node tiles split across v7x's 2 TensorCores; edge axis is the reduction
            dimension_semantics=("parallel", "arbitrary"),
            # working set is a few MiB at the default tiles; 48 MiB leaves headroom
            # for larger e_tile and stays under v7x's 64 MiB per-TC VMEM
            vmem_limit_bytes=48 * 1024 * 1024,
        ),
    )(first, count, rows_p, edge_proj, sel)
    return out[:n_nodes, :dh]


# ----------------------------------------------------------------------------
# SpGAT forward (glue in plain JAX, hot math in the fused kernel)
# ----------------------------------------------------------------------------
def spgat_forward(params, entity_embeddings, relation_embed,
                  edge_list, edge_type, edge_embed,
                  edge_list_nhop, edge_type_nhop, *, alpha):
    x = entity_embeddings                                         # (N, nfeat)

    # nhop relation features for the first attention layers
    edge_embed_nhop = (relation_embed[edge_type_nhop[:, 0]]
                       + relation_embed[edge_type_nhop[:, 1]])    # (E2, rdim)

    rows = jnp.concatenate([edge_list[0], edge_list_nhop[0]])     # (E,)
    cols = jnp.concatenate([edge_list[1], edge_list_nhop[1]])     # (E,)
    rel_all = jnp.concatenate([edge_embed, edge_embed_nhop], 0)   # (E, rdim)

    # --- multi-head attention (concat=True), all heads fused in one kernel call ---
    a_list = [a for (a, _) in params["heads"]]
    a2_list = [a2 for (_, a2) in params["heads"]]
    x = gat_layer(x, rows, cols, rel_all, a_list, a2_list,
                  alpha=alpha, apply_elu=True)                    # (N, H*nhid) bf16
    # TODO(synk): training-mode dropout (on x and on edge_e) not implemented;
    # eval-mode dropout is the identity.

    # --- relation projection: tiny GEMM, left to XLA per the perf review ---
    out_relation_1 = jnp.dot(relation_embed.astype(jnp.float32),
                             params["W"].astype(jnp.float32))     # (R, H*nhid)

    # new edge features from projected relations
    edge_embed2 = out_relation_1[edge_type]                       # (E1, D)
    edge_embed_nhop2 = (out_relation_1[edge_type_nhop[:, 0]]
                        + out_relation_1[edge_type_nhop[:, 1]])   # (E2, D)
    rel_all2 = jnp.concatenate([edge_embed2, edge_embed_nhop2], 0)

    # --- output attention layer (concat=False, single "head") ---
    a_out, a2_out = params["out_att"]
    h = gat_layer(x, rows, cols, rel_all2, [a_out], [a2_out],
                  alpha=alpha, apply_elu=False)                   # (N, H*nhid) bf16

    x = jax.nn.elu(h.astype(jnp.float32))                         # F.elu in SpGAT
    return x, out_relation_1


# ----------------------------------------------------------------------------
# Deterministic parameter init (matches PyTorch init shapes/schemes)
# ----------------------------------------------------------------------------
def _xavier_uniform(key, shape, gain):
    fan_out, fan_in = shape[0], shape[1]
    limit = gain * (6.0 / (fan_in + fan_out)) ** 0.5
    return jax.random.uniform(key, shape, jnp.float32, -limit, limit)


def _xavier_normal(key, shape, gain):
    fan_out, fan_in = shape[0], shape[1]
    std = gain * (2.0 / (fan_in + fan_out)) ** 0.5
    return std * jax.random.normal(key, shape, jnp.float32)


def init_spgat_params(key, nfeat, nhid, relation_dim, nheads):
    ks = jax.random.split(key, 2 * nheads + 3)
    heads = []
    for i in range(nheads):
        a = _xavier_normal(ks[2 * i], (nhid, 2 * nfeat + relation_dim), 1.414)
        a2 = _xavier_normal(ks[2 * i + 1], (1, nhid), 1.414)
        heads.append((a, a2))
    W = _xavier_uniform(ks[2 * nheads], (relation_dim, nheads * nhid), 1.414)
    d = nheads * nhid
    a_out = _xavier_normal(ks[2 * nheads + 1], (d, 2 * d + d), 1.414)
    a2_out = _xavier_normal(ks[2 * nheads + 2], (1, d), 1.414)
    return {"heads": heads, "W": W, "out_att": (a_out, a2_out)}


# ----------------------------------------------------------------------------
if __name__ == "__main__":
    key = jax.random.PRNGKey(0)
    N, nfeat, nhid, relation_dim, nheads = 16, 32, 8, 16, 2
    R, E1, E2 = 8, 12, 6
    alpha = 0.2  # LeakyReLU negative slope; dropout treated as identity (eval)

    k_par, k_ent, k_rel, k_e, k_et, k_en, k_etn = jax.random.split(key, 7)
    params = init_spgat_params(k_par, nfeat, nhid, relation_dim, nheads)

    entity_embeddings = jax.random.normal(k_ent, (N, nfeat), jnp.float32)
    relation_embed = jax.random.normal(k_rel, (R, relation_dim), jnp.float32)

    edge_list = jax.random.randint(k_e, (2, E1), 0, N, jnp.int32)
    edge_type = jax.random.randint(k_et, (E1,), 0, R, jnp.int32)
    edge_embed = relation_embed[edge_type]                        # (E1, relation_dim)
    edge_list_nhop = jax.random.randint(k_en, (2, E2), 0, N, jnp.int32)
    edge_type_nhop = jax.random.randint(k_etn, (E2, 2), 0, R, jnp.int32)

    x_out, out_rel = spgat_forward(
        params, entity_embeddings, relation_embed,
        edge_list, edge_type, edge_embed,
        edge_list_nhop, edge_type_nhop, alpha=alpha)

    jax.block_until_ready((x_out, out_rel))
    assert x_out.shape == (N, nheads * nhid)
    assert out_rel.shape == (R, nheads * nhid)
    assert bool(jnp.all(jnp.isfinite(x_out)))
    print("KERNEL_OK")
</pallas_src>

<mosaic_0001>
module attributes {stable_mosaic.version = 11 : i64} {
  func.func @_gat_scatter_kernel(%arg0: i32, %arg1: i32, %arg2: memref<1xi32, #tpu.memory_space<smem>>, %arg3: memref<1xi32, #tpu.memory_space<smem>>, %arg4: memref<1x128xi32, #tpu.memory_space<vmem>>, %arg5: memref<128x128xbf16, #tpu.memory_space<vmem>>, %arg6: memref<8x128xbf16, #tpu.memory_space<vmem>>, %arg7: memref<16x128xbf16, #tpu.memory_space<vmem>>, %arg8: memref<16x128xf32, #tpu.memory_space<vmem>>) attributes {dimension_semantics = [#tpu.dimension_semantics<parallel>, #tpu.dimension_semantics<arbitrary>], iteration_bounds = array<i64: 1, 1>, scalar_prefetch = 2 : i64, scratch_operands = 1 : i64, tpu.core_type = #tpu.core_type<tc>, window_params = [{transform_indices = @transform_0, window_bounds = array<i64: 1, 128>}, {transform_indices = @transform_1, window_bounds = array<i64: 128, 128>}, {pipeline_mode = #tpu.pipeline_mode<synchronous>, transform_indices = @transform_2, window_bounds = array<i64: 8, 128>}, {transform_indices = @transform_3, window_bounds = array<i64: 16, 128>}]} {
    %c0_i32 = arith.constant 0 : i32
    %0 = arith.cmpi eq, %arg1, %c0_i32 : i32
    %1 = arith.extui %0 : i1 to i32
    %c0_i32_0 = arith.constant 0 : i32
    %2 = arith.cmpi ne, %1, %c0_i32_0 : i32
    scf.if %2 {
      %cst = arith.constant 0.000000e+00 : f32
      %11 = vector.broadcast %cst : f32 to vector<16x128xf32>
      %c0 = arith.constant 0 : index
      %c0_4 = arith.constant 0 : index
      %12 = vector.load %arg8[%c0, %c0_4] : memref<16x128xf32, #tpu.memory_space<vmem>>, vector<16x128xf32>
      tpu.vector_store %arg8[%c0, %c0_4], %11 {strides = array<i32>} : memref<16x128xf32, #tpu.memory_space<vmem>>, vector<16x128xf32>,
    } else {
    }
    %3 = arith.index_cast %arg0 : i32 to index
    %4 = memref.load %arg3[%3] : memref<1xi32, #tpu.memory_space<smem>>
    %5 = arith.cmpi slt, %arg1, %4 : i32
    %6 = arith.extui %5 : i1 to i32
    %c0_i32_1 = arith.constant 0 : i32
    %7 = arith.cmpi ne, %6, %c0_i32_1 : i32
    scf.if %7 {
      %c0 = arith.constant 0 : index
      %c0_4 = arith.constant 0 : index
      %11 = vector.load %arg5[%c0, %c0_4] : memref<128x128xbf16, #tpu.memory_space<vmem>>, vector<128x128xbf16>
      %12 = vector.extract_strided_slice %11 {offsets = [0, 16], sizes = [128, 2], strides = [1, 1]} : vector<128x128xbf16> to vector<128x2xbf16>
      %13 = arith.extf %12 : vector<128x2xbf16> to vector<128x2xf32>
      %cst = arith.constant 0.000000e+00 : f32
      %14 = vector.broadcast %cst : f32 to vector<128x2xf32>
      %15 = arith.cmpf ogt, %13, %14 : vector<128x2xf32>
      %cst_5 = arith.constant 2.000000e-01 : f32
      %16 = vector.broadcast %cst_5 : f32 to vector<128x2xf32>
      %17 = arith.mulf %16, %13 : vector<128x2xf32>
      %18 = arith.select %15, %13, %17 : vector<128x2xi1>, vector<128x2xf32>
      %cst_6 = arith.constant 0.000000e+00 : f32
      %19 = vector.broadcast %cst_6 : f32 to vector<128x2xf32>
      %20 = arith.subf %19, %18 : vector<128x2xf32>
      %cst_7 = arith.constant 6.000000e+01 : f32
      %21 = vector.broadcast %cst_7 : f32 to vector<128x2xf32>
      %22 = arith.minimumf %20, %21 : vector<128x2xf32>
      %23 = math.exp %22 : vector<128x2xf32>
      %cst_8 = arith.constant 0.000000e+00 : f32
      %24 = vector.broadcast %cst_8 : f32 to vector<128x6xf32>
      %25 = tpu.concatenate %23, %24 in 1 : vector<128x2xf32>, vector<128x6xf32> -> vector<128x8xf32>
      %26 = arith.truncf %25 : vector<128x8xf32> to vector<128x8xbf16>
      %c0_9 = arith.constant 0 : index
      %c0_10 = arith.constant 0 : index
      %27 = vector.load %arg6[%c0_9, %c0_10] : memref<8x128xbf16, #tpu.memory_space<vmem>>, vector<8x128xbf16>
      %cst_11 = arith.constant dense<0.000000e+00> : vector<128x128xf32>
      %28 = tpu.matmul %26, %27, %cst_11 {dimension_numbers = #tpu.dot_dimension_numbers<[1], [0], [0], [1], [0, 0, 1, 1], [], []>} : vector<128x8xbf16>, vector<8x128xbf16>, vector<128x128xf32> -> vector<128x128xf32>
      %29 = tpu.iota {dimensions = array<i32: 1>} : vector<128x128xi32>
      %c16_i32 = arith.constant 16 : i32
      %30 = vector.broadcast %c16_i32 : i32 to vector<128x128xi32>
      %31 = arith.cmpi sge, %29, %30 : vector<128x128xi32>
      %c18_i32 = arith.constant 18 : i32
      %32 = vector.broadcast %c18_i32 : i32 to vector<128x128xi32>
      %33 = arith.cmpi slt, %29, %32 : vector<128x128xi32>
      %34 = arith.andi %31, %33 : vector<128x128xi1>
      %cst_12 = arith.constant 1.000000e+00 : f32
      %35 = arith.truncf %cst_12 : f32 to bf16
      %36 = vector.broadcast %35 : bf16 to vector<128x128xbf16>
      %37 = arith.select %34, %36, %11 : vector<128x128xi1>, vector<128x128xbf16>
      %38 = arith.extf %37 : vector<128x128xbf16> to vector<128x128xf32>
      %39 = arith.mulf %28, %38 : vector<128x128xf32>
      %40 = arith.truncf %39 : vector<128x128xf32> to vector<128x128xbf16>
      %c0_13 = arith.constant 0 : index
      %c0_14 = arith.constant 0 : index
      %41 = vector.load %arg4[%c0_13, %c0_14] : memref<1x128xi32, #tpu.memory_space<vmem>>, vector<1x128xi32>
      %c16_i32_15 = arith.constant 16 : i32
      %42 = arith.muli %arg0, %c16_i32_15 : i32
      %43 = vector.broadcast %42 : i32 to vector<1x128xi32>
      %44 = arith.subi %41, %43 : vector<1x128xi32>
      %45 = tpu.iota {dimensions = array<i32: 0>} : vector<16x128xi32>
      %46 = vector.broadcast %44 : vector<1x128xi32> to vector<16x128xi32>
      %47 = arith.cmpi eq, %45, %46 : vector<16x128xi32>
      %48 = arith.extui %47 : vector<16x128xi1> to vector<16x128xi32>
      %49 = arith.sitofp %48 : vector<16x128xi32> to vector<16x128xf32>
      %50 = arith.truncf %49 : vector<16x128xf32> to vector<16x128xbf16>
      %c0_16 = arith.constant 0 : index
      %c0_17 = arith.constant 0 : index
      %51 = vector.load %arg8[%c0_16, %c0_17] : memref<16x128xf32, #tpu.memory_space<vmem>>, vector<16x128xf32>
      %cst_18 = arith.constant dense<0.000000e+00> : vector<16x128xf32>
      %52 = tpu.matmul %50, %40, %cst_18 {dimension_numbers = #tpu.dot_dimension_numbers<[1], [0], [0], [1], [0, 0, 1, 1], [], []>} : vector<16x128xbf16>, vector<128x128xbf16>, vector<16x128xf32> -> vector<16x128xf32>
      %53 = arith.addf %51, %52 : vector<16x128xf32>
      %c0_19 = arith.constant 0 : index
      %c0_20 = arith.constant 0 : index
      %54 = vector.load %arg8[%c0_19, %c0_20] : memref<16x128xf32, #tpu.memory_space<vmem>>, vector<16x128xf32>
      tpu.vector_store %arg8[%c0_19, %c0_20], %53 {strides = array<i32>} : memref<16x128xf32, #tpu.memory_space<vmem>>, vector<16x128xf32>,
    } else {
    }
    %c0_i32_2 = arith.constant 0 : i32
    %8 = arith.cmpi eq, %arg1, %c0_i32_2 : i32
    %9 = arith.extui %8 : i1 to i32
    %c0_i32_3 = arith.constant 0 : i32
    %10 = arith.cmpi ne, %9, %c0_i32_3 : i32
    scf.if %10 {
      %c0 = arith.constant 0 : index
      %c0_4 = arith.constant 0 : index
      %11 = vector.load %arg8[%c0, %c0_4] : memref<16x128xf32, #tpu.memory_space<vmem>>, vector<16x128xf32>
      %12 = vector.extract_strided_slice %11 {offsets = [0, 16], sizes = [16, 1], strides = [1, 1]} : vector<16x128xf32> to vector<16x1xf32>
      %cst = arith.constant 0.000000e+00 : f32
      %13 = vector.broadcast %cst : f32 to vector<16x1xf32>
      %14 = arith.cmpf oeq, %12, %13 : vector<16x1xf32>
      %cst_5 = arith.constant 9.99999996E-13 : f32
      %15 = vector.broadcast %cst_5 : f32 to vector<16x1xf32>
      %16 = arith.select %14, %15, %12 : vector<16x1xi1>, vector<16x1xf32>
      %17 = vector.extract_strided_slice %11 {offsets = [0, 0], sizes = [16, 8], strides = [1, 1]} : vector<16x128xf32> to vector<16x8xf32>
      %18 = vector.broadcast %16 : vector<16x1xf32> to vector<16x8xf32>
      %19 = arith.divf %17, %18 : vector<16x8xf32>
      %20 = vector.extract_strided_slice %11 {offsets = [0, 17], sizes = [16, 1], strides = [1, 1]} : vector<16x128xf32> to vector<16x1xf32>
      %cst_6 = arith.constant 0.000000e+00 : f32
      %21 = vector.broadcast %cst_6 : f32 to vector<16x1xf32>
      %22 = arith.cmpf oeq, %20, %21 : vector<16x1xf32>
      %cst_7 = arith.constant 9.99999996E-13 : f32
      %23 = vector.broadcast %cst_7 : f32 to vector<16x1xf32>
      %24 = arith.select %22, %23, %20 : vector<16x1xi1>, vector<16x1xf32>
      %25 = vector.extract_strided_slice %11 {offsets = [0, 8], sizes = [16, 8], strides = [1, 1]} : vector<16x128xf32> to vector<16x8xf32>
      %26 = vector.broadcast %24 : vector<16x1xf32> to vector<16x8xf32>
      %27 = arith.divf %25, %26 : vector<16x8xf32>
      %28 = tpu.concatenate %19, %27 in 1 : vector<16x8xf32>, vector<16x8xf32> -> vector<16x16xf32>
      %cst_8 = arith.constant 0.000000e+00 : f32
      %29 = vector.broadcast %cst_8 : f32 to vector<16x16xf32>
      %30 = arith.cmpf ogt, %28, %29 : vector<16x16xf32>
      %31 = math.exp %28 : vector<16x16xf32>
      %cst_9 = arith.constant 1.000000e+00 : f32
      %32 = vector.broadcast %cst_9 : f32 to vector<16x16xf32>
      %33 = arith.subf %31, %32 : vector<16x16xf32>
      %34 = arith.select %30, %28, %33 : vector<16x16xi1>, vector<16x16xf32>
      %cst_10 = arith.constant 0.000000e+00 : f32
      %35 = vector.broadcast %cst_10 : f32 to vector<16x112xf32>
      %36 = tpu.concatenate %34, %35 in 1 : vector<16x16xf32>, vector<16x112xf32> -> vector<16x128xf32>
      %37 = arith.truncf %36 : vector<16x128xf32> to vector<16x128xbf16>
      %c0_11 = arith.constant 0 : index
      %c0_12 = arith.constant 0 : index
      %38 = vector.load %arg7[%c0_11, %c0_12] : memref<16x128xbf16, #tpu.memory_space<vmem>>, vector<16x128xbf16>
      tpu.vector_store %arg7[%c0_11, %c0_12], %37 {strides = array<i32>} : memref<16x128xbf16, #tpu.memory_space<vmem>>, vector<16x128xbf16>,
    } else {
    }
    return
  }
  func.func @transform_0(%arg0: i32, %arg1: i32, %arg2: memref<1xi32, #tpu.memory_space<smem>>, %arg3: memref<1xi32, #tpu.memory_space<smem>>) -> (i32, i32) {
    %0 = arith.index_cast %arg0 : i32 to index
    %1 = memref.load %arg2[%0] : memref<1xi32, #tpu.memory_space<smem>>
    %2 = arith.index_cast %arg0 : i32 to index
    %3 = memref.load %arg3[%2] : memref<1xi32, #tpu.memory_space<smem>>
    %c1_i32 = arith.constant 1 : i32
    %4 = arith.subi %3, %c1_i32 : i32
    %c0_i32 = arith.constant 0 : i32
    %5 = arith.maxsi %4, %c0_i32 : i32
    %6 = arith.minsi %arg1, %5 : i32
    %7 = arith.addi %1, %6 : i32
    %c0_i32_0 = arith.constant 0 : i32
    %8 = arith.minsi %7, %c0_i32_0 : i32
    %c0_i32_1 = arith.constant 0 : i32
    %c0_i32_2 = arith.constant 0 : i32
    return %c0_i32_1, %8 : i32, i32
  }
  func.func @transform_1(%arg0: i32, %arg1: i32, %arg2: memref<1xi32, #tpu.memory_space<smem>>, %arg3: memref<1xi32, #tpu.memory_space<smem>>) -> (i32, i32) {
    %0 = arith.index_cast %arg0 : i32 to index
    %1 = memref.load %arg2[%0] : memref<1xi32, #tpu.memory_space<smem>>
    %2 = arith.index_cast %arg0 : i32 to index
    %3 = memref.load %arg3[%2] : memref<1xi32, #tpu.memory_space<smem>>
    %c1_i32 = arith.constant 1 : i32
    %4 = arith.subi %3, %c1_i32 : i32
    %c0_i32 = arith.constant 0 : i32
    %5 = arith.maxsi %4, %c0_i32 : i32
    %6 = arith.minsi %arg1, %5 : i32
    %7 = arith.addi %1, %6 : i32
    %c0_i32_0 = arith.constant 0 : i32
    %8 = arith.minsi %7, %c0_i32_0 : i32
    %c0_i32_1 = arith.constant 0 : i32
    %c0_i32_2 = arith.constant 0 : i32
    return %8, %c0_i32_1 : i32, i32
  }
  func.func @transform_2(%arg0: i32, %arg1: i32, %arg2: memref<1xi32, #tpu.memory_space<smem>>, %arg3: memref<1xi32, #tpu.memory_space<smem>>) -> (i32, i32) {
    %c0_i32 = arith.constant 0 : i32
    %c0_i32_0 = arith.constant 0 : i32
    %c0_i32_1 = arith.constant 0 : i32
    return %c0_i32, %c0_i32_0 : i32, i32
  }
  func.func @transform_3(%arg0: i32, %arg1: i32, %arg2: memref<1xi32, #tpu.memory_space<smem>>, %arg3: memref<1xi32, #tpu.memory_space<smem>>) -> (i32, i32) {
    %c0_i32 = arith.constant 0 : i32
    %c0_i32_0 = arith.constant 0 : i32
    return %arg0, %c0_i32 : i32, i32
  }
}

</mosaic_0001>

<llo_original>
// kernel: tpu_custom_call.1
$region0: #{tpu_custom_call.1}
  #allocation0 [shape = 'u32[]', space=smem, size = 0x4, offset = 0x4, fixed_abs, tag = 'smem constant byte address 0x4 - core index']
  #allocation1 [shape = 'u32[144,128]{1,0:T(1,128)}', space=vmem, size = 0x12000, scoped, tag = 'internal scratch']
  #allocation2 [shape = 'f32[16,128]{1,0:T(8,128)}', space=vmem, size = 0x2000, scoped, tag = 'scratch operand']
  #allocation3 [shape = 's32[1]{0}', space=sflag, size = 0x4, scoped, tag = 'scoped memory for tpu_custom_call.1']
  #allocation4 [shape = 's32[1]{0:T(128)S(6)}', space=smem, size = 0x200, scoped, tag = 'prefetched SMEM operand 0']
  #allocation5 [shape = 's32[1]{0:T(128)S(6)}', space=smem, size = 0x200, scoped, tag = 'prefetched SMEM operand 1']
  %s0 = inlined_call_operand.<no memory space> [shape: s32[1], index: 0, kind: input, shape index: {}]
  %s1 = inlined_call_operand.<no memory space> [shape: s32[1], index: 1, kind: input, shape index: {}]
  %s2 = inlined_call_operand.vmem [shape: s32[1,128], index: 2, kind: input, shape index: {}]
  %s3 = inlined_call_operand.hbm [shape: bf16[128,128], index: 3, kind: input, shape index: {}]
  %s4 = inlined_call_operand.vmem [shape: bf16[8,128], index: 4, kind: input, shape index: {}]
  %s5 = inlined_call_operand.hbm [shape: bf16[16,128], index: 5, kind: output, shape index: {}]
  %s6 = sld [smem:[#allocation0]]
  $region38: #{tpu_custom_call.1} parent=0
    _
  %s8 = ssub.s32 1, %s6
  %s9 = scalar_select 0, %s8, %s6
  %10 = sst [smem:[#allocation4]] %s0
  %11 = sst [smem:[#allocation5]] %s1
  $region1: #{tpu_custom_call.1} parent=0
    #allocation6 [shape = 'u8[32768]{0}', space=vmem, size = 0x8000, scoped, tag = 'input window, operand 3, single buffered']
    #allocation7 [shape = 's32[1]{0}', space=sflag, size = 0x4, scoped, tag = 'scoped memory for tpu_custom_call.1']
    #allocation8 [shape = 's32[1]{0}', space=sflag, size = 0x4, scoped, tag = 'scoped memory for tpu_custom_call.1']
    #allocation9 [shape = 'u8[4096]{0}', space=vmem, size = 0x1000, scoped, tag = 'output window, operand 0, single buffered']
    %12 = vsyncpa [#allocation7], 0
    %13 = vsyncpa [#allocation8], 0
    // Predicated region
    $region2: #{tpu_custom_call.1} parent=1 // pred_check
      _
    $region3: #{tpu_custom_call.1} parent=1 // pred_check_branch
      %15 = sbr.rel (0) target = $region5
    $region4: #{tpu_custom_call.1} parent=1 // pred_region
      %s16 = sld [smem:[#allocation4]]
      %s17 = sld [smem:[#allocation5]]
      %s18 = ssub.s32 %s17, 1
      %p19 = scmp.gt.s32.totalorder %s18, 0
      %s20 = scalar_select %p19, %s18, 0
      %p21 = scmp.lt.s32.totalorder 0, %s20
      %s22 = scalar_select %p21, 0, %s20
      %s23 = sadd.s32 %s16, %s22
      %p24 = scmp.lt.s32.totalorder %s23, 0
      %s25 = scalar_select %p24, %s23, 0
      %p26 = scmp.lt.s32.totalorder %s25, 0
      %s27 = scalar_select %p26, %s25, 0
      %s28 = scalar_lea.vmem %s2, %s27
      %s29 = sld [smem:[#allocation4]]
      %s30 = sld [smem:[#allocation5]]
      %s31 = ssub.s32 %s30, 1
      %p32 = scmp.gt.s32.totalorder %s31, 0
      %s33 = scalar_select %p32, %s31, 0
      %p34 = scmp.lt.s32.totalorder 0, %s33
      %s35 = scalar_select %p34, 0, %s33
      %s36 = sadd.s32 %s29, %s35
      %p37 = scmp.lt.s32.totalorder %s36, 0
      %s38 = scalar_select %p37, %s36, 0
    $region5: #{tpu_custom_call.1} parent=1 // pred_fallthru
      _
    // Predicated region
    $region6: #{tpu_custom_call.1} parent=1 // pred_check
      _
    $region7: #{tpu_custom_call.1} parent=1 // pred_check_branch
      %40 = sbr.rel (0) target = $region9
    $region8: #{tpu_custom_call.1} parent=1 // pred_region
      %s41 = sld [smem:[#allocation4]]
      %s42 = sld [smem:[#allocation5]]
      %s43 = ssub.s32 %s42, 1
      %p44 = scmp.gt.s32.totalorder %s43, 0
      %s45 = scalar_select %p44, %s43, 0
      %p46 = scmp.lt.s32.totalorder 0, %s45
      %s47 = scalar_select %p46, 0, %s45
      %s48 = sadd.s32 %s41, %s47
      %p49 = scmp.lt.s32.totalorder %s48, 0
      %s50 = scalar_select %p49, %s48, 0
      %s51 = smul.u32 16, %s50
      %s53 = ssub.s32 1024, 1024
      %54 = vsyncadd [#allocation7], %s53
      %s55 = smul.addr %s51, 64
      %s56 = scalar_lea.hbm %s3, %s55
      %s57 = sshll.u32 [#allocation6], 4
      %s58 = int_to_ptr.vmem [resolvable:$true] %s57
      %63 = dma.hbm_to_vmem [thread:$0]  %s56, 1024, %s58, [#allocation7], 64, 64, 4
    $region9: #{tpu_custom_call.1} parent=1 // pred_fallthru
      _
    // Predicated region
    $region10: #{tpu_custom_call.1} parent=1 // pred_check
      _
    $region11: #{tpu_custom_call.1} parent=1 // pred_check_branch
      %65 = sbr.rel (0) target = $region13
    $region12: #{tpu_custom_call.1} parent=1 // pred_region
      _
    $region13: #{tpu_custom_call.1} parent=1 // pred_fallthru
      _
    // Predicated region
    $region14: #{tpu_custom_call.1} parent=1 // pred_check
      _
    $region15: #{tpu_custom_call.1} parent=1 // pred_check_branch
      %67 = sbr.rel (0) target = $region17
    $region16: #{tpu_custom_call.1} parent=1 // pred_region
      %68 = dma.done [#allocation7], 1024
    $region17: #{tpu_custom_call.1} parent=1 // pred_fallthru
      _
    %s69 = sld [smem:[#allocation4]]
    %s70 = sld [smem:[#allocation5]]
    %s71 = ssub.s32 %s70, 1
    %p72 = scmp.gt.s32.totalorder %s71, 0
    %s73 = scalar_select %p72, %s71, 0
    %p74 = scmp.lt.s32.totalorder 0, %s73
    %s75 = scalar_select %p74, 0, %s73
    %s76 = sadd.s32 %s69, %s75
    %p77 = scmp.lt.s32.totalorder %s76, 0
    %s78 = scalar_select %p77, %s76, 0
    %p79 = scmp.lt.s32.totalorder %s78, 0
    %s80 = scalar_select %p79, %s78, 0
    %s81 = scalar_lea.vmem %s2, %s80
    %s82 = sld [smem:[#allocation4]]
    %s83 = sld [smem:[#allocation5]]
    %s84 = ssub.s32 %s83, 1
    %p85 = scmp.gt.s32.totalorder %s84, 0
    %s86 = scalar_select %p85, %s84, 0
    %p87 = scmp.lt.s32.totalorder 0, %s86
    %s88 = scalar_select %p87, 0, %s86
    %s89 = sadd.s32 %s82, %s88
    %p90 = scmp.lt.s32.totalorder %s89, 0
    %s91 = scalar_select %p90, %s89, 0
    %p92 = scmp.lt.s32.totalorder %s91, 0
    %s93 = scalar_select %p92, %s91, 0
    %s94 = scalar_lea.vmem %s2, %s93
    %s95 = sld [smem:[#allocation4]]
    %s96 = sld [smem:[#allocation5]]
    %s97 = ssub.s32 %s96, 1
    %p98 = scmp.gt.s32.totalorder %s97, 0
    %s99 = scalar_select %p98, %s97, 0
    %p100 = scmp.lt.s32.totalorder 0, %s99
    %s101 = scalar_select %p100, 0, %s99
    %s102 = sadd.s32 %s95, %s101
    %p103 = scmp.lt.s32.totalorder %s102, 0
    %s104 = scalar_select %p103, %s102, 0
    %s105 = sld [smem:[#allocation4]]
    %s106 = sld [smem:[#allocation5]]
    %s107 = ssub.s32 %s106, 1
    %p108 = scmp.gt.s32.totalorder %s107, 0
    %s109 = scalar_select %p108, %s107, 0
    %p110 = scmp.lt.s32.totalorder 0, %s109
    %s111 = scalar_select %p110, 0, %s109
    %s112 = sadd.s32 %s105, %s111
    %p113 = scmp.lt.s32.totalorder %s112, 0
    %s114 = scalar_select %p113, %s112, 0
    %s115 = smul.u32 16, %s114
    %p118 = scmp.eq.s32.totalorder 0, 0
    // Predicated region
    $region18: #{tpu_custom_call.1} parent=1 // pred_check
      %p119 = pneg %p118
    $region19: #{tpu_custom_call.1} parent=1 // pred_check_branch
      %121 = sbr.rel (%p119) target = $region21
    $region20: #{tpu_custom_call.1} parent=1 // pred_region
      %122 = vst [vmem:[#allocation2] sm:$0xff] 0.0
      %123 = vst [vmem:[#allocation2 + $0x8] sm:$0xff] 0.0
    $region21: #{tpu_custom_call.1} parent=1 // pred_fallthru
      _
    %s124 = sld [smem:[#allocation5]]
    %p125 = scmp.lt.s32.totalorder 0, %s124
    // Predicated region
    $region22: #{tpu_custom_call.1} parent=1 // pred_check
      %p126 = pneg %p125
    $region23: #{tpu_custom_call.1} parent=1 // pred_check_branch
      %128 = sbr.rel (%p126) target = $region25
    $region24: #{tpu_custom_call.1} parent=1 // pred_region
      %v129 = vld [vmem:[#allocation6] sm:$0xf]
      %v130 = vld [vmem:[#allocation6 + $0x4] sm:$0xf]
      %v131 = vld [vmem:[#allocation6 + $0x8] sm:$0xf]
      %v132 = vld [vmem:[#allocation6 + $0xc] sm:$0xf]
      %v133 = vld [vmem:[#allocation6 + $0x10] sm:$0xf]
      %v134 = vld [vmem:[#allocation6 + $0x14] sm:$0xf]
      %v135 = vld [vmem:[#allocation6 + $0x18] sm:$0xf]
      %v136 = vld [vmem:[#allocation6 + $0x1c] sm:$0xf]
      %v137 = vld [vmem:[#allocation6 + $0x20] sm:$0xf]
      %v138 = vld [vmem:[#allocation6 + $0x24] sm:$0xf]
      %v139 = vld [vmem:[#allocation6 + $0x28] sm:$0xf]
      %v140 = vld [vmem:[#allocation6 + $0x2c] sm:$0xf]
      %v141 = vld [vmem:[#allocation6 + $0x30] sm:$0xf]
      %v142 = vld [vmem:[#allocation6 + $0x34] sm:$0xf]
      %v143 = vld [vmem:[#allocation6 + $0x38] sm:$0xf]
      %v144 = vld [vmem:[#allocation6 + $0x3c] sm:$0xf]
      %v145 = vunpack.c.l.bf16 %v129
      %v146 = vunpack.c.l.bf16 %v130
      %v147 = vunpack.c.l.bf16 %v131
      %v148 = vunpack.c.l.bf16 %v132
      %v149 = vunpack.c.l.bf16 %v133
      %v150 = vunpack.c.l.bf16 %v134
      %v151 = vunpack.c.l.bf16 %v135
      %v152 = vunpack.c.l.bf16 %v136
      %v153 = vunpack.c.l.bf16 %v137
      %v154 = vunpack.c.l.bf16 %v138
      %v155 = vunpack.c.l.bf16 %v139
      %v156 = vunpack.c.l.bf16 %v140
      %v157 = vunpack.c.l.bf16 %v141
      %v158 = vunpack.c.l.bf16 %v142
      %v159 = vunpack.c.l.bf16 %v143
      %v160 = vunpack.c.l.bf16 %v144
      %vm161 = vcmp.gt.f32.partialorder %v145, 0.0
      %vm162 = vcmp.gt.f32.partialorder %v146, 0.0
      %vm163 = vcmp.gt.f32.partialorder %v147, 0.0
      %vm164 = vcmp.gt.f32.partialorder %v148, 0.0
      %vm165 = vcmp.gt.f32.partialorder %v149, 0.0
      %vm166 = vcmp.gt.f32.partialorder %v150, 0.0
      %vm167 = vcmp.gt.f32.partialorder %v151, 0.0
      %vm168 = vcmp.gt.f32.partialorder %v152, 0.0
      %vm169 = vcmp.gt.f32.partialorder %v153, 0.0
      %vm170 = vcmp.gt.f32.partialorder %v154, 0.0
      %vm171 = vcmp.gt.f32.partialorder %v155, 0.0
      %vm172 = vcmp.gt.f32.partialorder %v156, 0.0
      %vm173 = vcmp.gt.f32.partialorder %v157, 0.0
      %vm174 = vcmp.gt.f32.partialorder %v158, 0.0
      %vm175 = vcmp.gt.f32.partialorder %v159, 0.0
      %vm176 = vcmp.gt.f32.partialorder %v160, 0.0
      %v177 = vmul.f32 %v145, 0.2
      %v178 = vmul.f32 %v146, 0.2
      %v179 = vmul.f32 %v147, 0.2
      %v180 = vmul.f32 %v148, 0.2
      %v181 = vmul.f32 %v149, 0.2
      %v182 = vmul.f32 %v150, 0.2
      %v183 = vmul.f32 %v151, 0.2
      %v184 = vmul.f32 %v152, 0.2
      %v185 = vmul.f32 %v153, 0.2
      %v186 = vmul.f32 %v154, 0.2
      %v187 = vmul.f32 %v155, 0.2
      %v188 = vmul.f32 %v156, 0.2
      %v189 = vmul.f32 %v157, 0.2
      %v190 = vmul.f32 %v158, 0.2
      %v191 = vmul.f32 %v159, 0.2
      %v192 = vmul.f32 %v160, 0.2
      %v193 = vsel %vm161, %v145, %v177
      %v194 = vsel %vm162, %v146, %v178
      %v195 = vsel %vm163, %v147, %v179
      %v196 = vsel %vm164, %v148, %v180
      %v197 = vsel %vm165, %v149, %v181
      %v198 = vsel %vm166, %v150, %v182
      %v199 = vsel %vm167, %v151, %v183
      %v200 = vsel %vm168, %v152, %v184
      %v201 = vsel %vm169, %v153, %v185
      %v202 = vsel %vm170, %v154, %v186
      %v203 = vsel %vm171, %v155, %v187
      %v204 = vsel %vm172, %v156, %v188
      %v205 = vsel %vm173, %v157, %v189
      %v206 = vsel %vm174, %v158, %v190
      %v207 = vsel %vm175, %v159, %v191
      %v208 = vsel %vm176, %v160, %v192
      %v209 = vsub.f32 0.0, %v193
      %v210 = vsub.f32 0.0, %v194
      %v211 = vsub.f32 0.0, %v195
      %v212 = vsub.f32 0.0, %v196
      %v213 = vsub.f32 0.0, %v197
      %v214 = vsub.f32 0.0, %v198
      %v215 = vsub.f32 0.0, %v199
      %v216 = vsub.f32 0.0, %v200
      %v217 = vsub.f32 0.0, %v201
      %v218 = vsub.f32 0.0, %v202
      %v219 = vsub.f32 0.0, %v203
      %v220 = vsub.f32 0.0, %v204
      %v221 = vsub.f32 0.0, %v205
      %v222 = vsub.f32 0.0, %v206
      %v223 = vsub.f32 0.0, %v207
      %v224 = vsub.f32 0.0, %v208
      %v225 = vmin.f32 %v209, 60.0
      %v226 = vmin.f32 %v210, 60.0
      %v227 = vmin.f32 %v211, 60.0
      %v228 = vmin.f32 %v212, 60.0
      %v229 = vmin.f32 %v213, 60.0
      %v230 = vmin.f32 %v214, 60.0
      %v231 = vmin.f32 %v215, 60.0
      %v232 = vmin.f32 %v216, 60.0
      %v233 = vmin.f32 %v217, 60.0
      %v234 = vmin.f32 %v218, 60.0
      %v235 = vmin.f32 %v219, 60.0
      %v236 = vmin.f32 %v220, 60.0
      %v237 = vmin.f32 %v221, 60.0
      %v238 = vmin.f32 %v222, 60.0
      %v239 = vmin.f32 %v223, 60.0
      %v240 = vmin.f32 %v224, 60.0
      %v241 = vmul.f32 %v225, 1.442695
      %v242 = vpow.pop %v241
      %v243 = vmul.f32 %v226, 1.442695
      %v244 = vpow.pop %v243
      %v245 = vmul.f32 %v227, 1.442695
      %v246 = vpow.pop %v245
      %v247 = vmul.f32 %v228, 1.442695
      %v248 = vpow.pop %v247
      %v249 = vmul.f32 %v229, 1.442695
      %v250 = vpow.pop %v249
      %v251 = vmul.f32 %v230, 1.442695
      %v252 = vpow.pop %v251
      %v253 = vmul.f32 %v231, 1.442695
      %v254 = vpow.pop %v253
      %v255 = vmul.f32 %v232, 1.442695
      %v256 = vpow.pop %v255
      %v257 = vmul.f32 %v233, 1.442695
      %v258 = vpow.pop %v257
      %v259 = vmul.f32 %v234, 1.442695
      %v260 = vpow.pop %v259
      %v261 = vmul.f32 %v235, 1.442695
      %v262 = vpow.pop %v261
      %v263 = vmul.f32 %v236, 1.442695
      %v264 = vpow.pop %v263
      %v265 = vmul.f32 %v237, 1.442695
      %v266 = vpow.pop %v265
      %v267 = vmul.f32 %v238, 1.442695
      %v268 = vpow.pop %v267
      %v269 = vmul.f32 %v239, 1.442695
      %v270 = vpow.pop %v269
      %v271 = vmul.f32 %v240, 1.442695
      %v272 = vpow.pop %v271
      %289 = vrot.lane.b32.xlu0 %v242, 112
      %v290 = vpop.permute.xlu0 %289
      %291 = vrot.lane.b32.xlu0 %v244, 112
      %v292 = vpop.permute.xlu0 %291
      %293 = vrot.lane.b32.xlu0 %v246, 112
      %v294 = vpop.permute.xlu0 %293
      %295 = vrot.lane.b32.xlu0 %v248, 112
      %v296 = vpop.permute.xlu0 %295
      %297 = vrot.lane.b32.xlu0 %v250, 112
      %v298 = vpop.permute.xlu0 %297
      %299 = vrot.lane.b32.xlu0 %v252, 112
      %v300 = vpop.permute.xlu0 %299
      %301 = vrot.lane.b32.xlu0 %v254, 112
      %v302 = vpop.permute.xlu0 %301
      %303 = vrot.lane.b32.xlu0 %v256, 112
      %v304 = vpop.permute.xlu0 %303
      %305 = vrot.lane.b32.xlu0 %v258, 112
      %v306 = vpop.permute.xlu0 %305
      %307 = vrot.lane.b32.xlu0 %v260, 112
      %v308 = vpop.permute.xlu0 %307
      %309 = vrot.lane.b32.xlu0 %v262, 112
      %v310 = vpop.permute.xlu0 %309
      %311 = vrot.lane.b32.xlu0 %v264, 112
      %v312 = vpop.permute.xlu0 %311
      %313 = vrot.lane.b32.xlu0 %v266, 112
      %v314 = vpop.permute.xlu0 %313
      %315 = vrot.lane.b32.xlu0 %v268, 112
      %v316 = vpop.permute.xlu0 %315
      %317 = vrot.lane.b32.xlu0 %v270, 112
      %v318 = vpop.permute.xlu0 %317
      %319 = vrot.lane.b32.xlu0 %v272, 112
      %v320 = vpop.permute.xlu0 %319
      %vm337 = vcmask 15360
      %v338 = vsel %vm337, %v290, 0.0
      %v339 = vsel %vm337, %v292, 0.0
      %v340 = vsel %vm337, %v294, 0.0
      %v341 = vsel %vm337, %v296, 0.0
      %v342 = vsel %vm337, %v298, 0.0
      %v343 = vsel %vm337, %v300, 0.0
      %v344 = vsel %vm337, %v302, 0.0
      %v345 = vsel %vm337, %v304, 0.0
      %v346 = vsel %vm337, %v306, 0.0
      %v347 = vsel %vm337, %v308, 0.0
      %v348 = vsel %vm337, %v310, 0.0
      %v349 = vsel %vm337, %v312, 0.0
      %v350 = vsel %vm337, %v314, 0.0
      %v351 = vsel %vm337, %v316, 0.0
      %v352 = vsel %vm337, %v318, 0.0
      %v353 = vsel %vm337, %v320, 0.0
      %v354 = vpack.c.bf16 %v339, %v338
      %v355 = vpack.c.bf16 %v341, %v340
      %v356 = vpack.c.bf16 %v343, %v342
      %v357 = vpack.c.bf16 %v345, %v344
      %v358 = vpack.c.bf16 %v347, %v346
      %v359 = vpack.c.bf16 %v349, %v348
      %v360 = vpack.c.bf16 %v351, %v350
      %v361 = vpack.c.bf16 %v353, %v352
      %v362 = vld [vmem:[%s4] sm:$0xf]
      %vm363 = vcmask 64512
      %v365 = vsel %vm363, %v354, 0
      %v368 = vsel %vm363, %v355, 0
      %v371 = vsel %vm363, %v356, 0
      %v374 = vsel %vm363, %v357, 0
      %v377 = vsel %vm363, %v358, 0
      %v380 = vsel %vm363, %v359, 0
      %v383 = vsel %vm363, %v360, 0
      %v386 = vsel %vm363, %v361, 0
      %vm388 = vcmask 1043456
      %v390 = vsel %vm388, %v362, 0
      %392 = vmatprep.subr.bf16.mxu0 0
      %393 = vmatpush1.bf16.msra.mxu0 0
      %394 = vmatprep.subr.bf16.mxu0 0
      %395 = vmatpush1.bf16.msra.mxu0 0
      %396 = vmatprep.subr.bf16.mxu0 0
      %397 = vmatpush1.bf16.msra.mxu0 0
      %398 = vmatprep.subr.bf16.mxu0 0
      %399 = vmatpush1.bf16.msra.mxu0 0
      %400 = vmatprep.subr.bf16.mxu0 0
      %401 = vmatpush1.bf16.msra.mxu0 0
      %402 = vmatprep.subr.bf16.mxu0 0
      %403 = vmatpush1.bf16.msra.mxu0 0
      %404 = vmatprep.subr.bf16.mxu0 0
      %405 = vmatpush1.bf16.msra.mxu0 0
      %406 = vmatprep.subr.bf16.mxu0 0
      %407 = vmatpush1.bf16.msra.mxu0 %v390
      %408 = vmatprep.subr.bf16.mxu0 0
      %409 = vmatpush2.bf16.msra.mxu0 0
      %410 = vmatprep.subr.bf16.mxu0 0
      %411 = vmatpush2.bf16.msra.mxu0 0
      %412 = vmatprep.subr.bf16.mxu0 0
      %413 = vmatpush2.bf16.msra.mxu0 0
      %414 = vmatprep.subr.bf16.mxu0 0
      %415 = vmatpush2.bf16.msra.mxu0 0
      %416 = vmatprep.subr.bf16.mxu0 0
      %417 = vmatpush2.bf16.msra.mxu0 0
      %418 = vmatprep.subr.bf16.mxu0 0
      %419 = vmatpush2.bf16.msra.mxu0 0
      %420 = vmatprep.subr.bf16.mxu0 0
      %421 = vmatpush2.bf16.msra.mxu0 0
      %422 = vmatprep.subr.bf16.mxu0 0
      %423 = vmatpush2.bf16.msra.mxu0 0
      %424 = vmatprep.mubr.bf16.mxu0 0
      %425 = vmatmul.mubr.bf16.gmra.mxu0 %v365
      %v426 = vpop.f32.mrf.mxu0
      %v427 = vadd.f32 0.0, %v426
      %v428 = vpop.f32.mrf.mxu0
      %v429 = vpop.f32.mrf.mxu0
      %v430 = vadd.f32 0.0, %v429
      %v431 = vpop.f32.mrf.mxu0
      %432 = vmatprep.mubr.bf16.mxu0 0
      %433 = vmatmul.mubr.bf16.gmra.mxu0 %v368
      %v434 = vpop.f32.mrf.mxu0
      %v435 = vadd.f32 0.0, %v434
      %v436 = vpop.f32.mrf.mxu0
      %v437 = vpop.f32.mrf.mxu0
      %v438 = vadd.f32 0.0, %v437
      %v439 = vpop.f32.mrf.mxu0
      %440 = vmatprep.mubr.bf16.mxu0 0
      %441 = vmatmul.mubr.bf16.gmra.mxu0 %v371
      %v442 = vpop.f32.mrf.mxu0
      %v443 = vadd.f32 0.0, %v442
      %v444 = vpop.f32.mrf.mxu0
      %v445 = vpop.f32.mrf.mxu0
      %v446 = vadd.f32 0.0, %v445
      %v447 = vpop.f32.mrf.mxu0
      %448 = vmatprep.mubr.bf16.mxu0 0
      %449 = vmatmul.mubr.bf16.gmra.mxu0 %v374
      %v450 = vpop.f32.mrf.mxu0
      %v451 = vadd.f32 0.0, %v450
      %v452 = vpop.f32.mrf.mxu0
      %v453 = vpop.f32.mrf.mxu0
      %v454 = vadd.f32 0.0, %v453
      %v455 = vpop.f32.mrf.mxu0
      %456 = vmatprep.mubr.bf16.mxu0 0
      %457 = vmatmul.mubr.bf16.gmra.mxu0 %v377
      %v458 = vpop.f32.mrf.mxu0
      %v459 = vadd.f32 0.0, %v458
      %v460 = vpop.f32.mrf.mxu0
      %v461 = vpop.f32.mrf.mxu0
      %v462 = vadd.f32 0.0, %v461
      %v463 = vpop.f32.mrf.mxu0
      %464 = vmatprep.mubr.bf16.mxu0 0
      %465 = vmatmul.mubr.bf16.gmra.mxu0 %v380
      %v466 = vpop.f32.mrf.mxu0
      %v467 = vadd.f32 0.0, %v466
      %v468 = vpop.f32.mrf.mxu0
      %v469 = vpop.f32.mrf.mxu0
      %v470 = vadd.f32 0.0, %v469
      %v471 = vpop.f32.mrf.mxu0
      %472 = vmatprep.mubr.bf16.mxu0 0
      %473 = vmatmul.mubr.bf16.gmra.mxu0 %v383
      %v474 = vpop.f32.mrf.mxu0
      %v475 = vadd.f32 0.0, %v474
      %v476 = vpop.f32.mrf.mxu0
      %v477 = vpop.f32.mrf.mxu0
      %v478 = vadd.f32 0.0, %v477
      %v479 = vpop.f32.mrf.mxu0
      %480 = vmatprep.mubr.bf16.mxu0 0
      %481 = vmatmul.mubr.bf16.gmra.mxu0 %v386
      %v482 = vpop.f32.mrf.mxu0
      %v483 = vadd.f32 0.0, %v482
      %v484 = vpop.f32.mrf.mxu0
      %v485 = vpop.f32.mrf.mxu0
      %v486 = vadd.f32 0.0, %v485
      %v487 = vpop.f32.mrf.mxu0
      %488 = vdwg.mxu0
      %v489 = vlaneseq
      %v490 = vand.u32 %v489, 127
      %vm491 = vcmp.ge.s32.totalorder %v490, 16
      %vm492 = vcmp.lt.s32.totalorder %v490, 18
      %vm493 = vmand %vm491, %vm492
      %vm494 = vmpackc.low %vm493, %vm493
      %v495 = vsel %vm494, 1065369472, %v129
      %v496 = vsel %vm494, 1065369472, %v130
      %v497 = vsel %vm494, 1065369472, %v131
      %v498 = vsel %vm494, 1065369472, %v132
      %v499 = vsel %vm494, 1065369472, %v133
      %v500 = vsel %vm494, 1065369472, %v134
      %v501 = vsel %vm494, 1065369472, %v135
      %v502 = vsel %vm494, 1065369472, %v136
      %v503 = vsel %vm494, 1065369472, %v137
      %v504 = vsel %vm494, 1065369472, %v138
      %v505 = vsel %vm494, 1065369472, %v139
      %v506 = vsel %vm494, 1065369472, %v140
      %v507 = vsel %vm494, 1065369472, %v141
      %v508 = vsel %vm494, 1065369472, %v142
      %v509 = vsel %vm494, 1065369472, %v143
      %v510 = vsel %vm494, 1065369472, %v144
      %v511 = vunpack.c.l.bf16 %v495
      %v512 = vunpack.c.l.bf16 %v496
      %v513 = vunpack.c.l.bf16 %v497
      %v514 = vunpack.c.l.bf16 %v498
      %v515 = vunpack.c.l.bf16 %v499
      %v516 = vunpack.c.l.bf16 %v500
      %v517 = vunpack.c.l.bf16 %v501
      %v518 = vunpack.c.l.bf16 %v502
      %v519 = vunpack.c.l.bf16 %v503
      %v520 = vunpack.c.l.bf16 %v504
      %v521 = vunpack.c.l.bf16 %v505
      %v522 = vunpack.c.l.bf16 %v506
      %v523 = vunpack.c.l.bf16 %v507
      %v524 = vunpack.c.l.bf16 %v508
      %v525 = vunpack.c.l.bf16 %v509
      %v526 = vunpack.c.l.bf16 %v510
      %v527 = vmul.f32 %v427, %v511
      %v528 = vmul.f32 %v430, %v512
      %v529 = vmul.f32 %v435, %v513
      %v530 = vmul.f32 %v438, %v514
      %v531 = vmul.f32 %v443, %v515
      %v532 = vmul.f32 %v446, %v516
      %v533 = vmul.f32 %v451, %v517
      %v534 = vmul.f32 %v454, %v518
      %v535 = vmul.f32 %v459, %v519
      %v536 = vmul.f32 %v462, %v520
      %v537 = vmul.f32 %v467, %v521
      %v538 = vmul.f32 %v470, %v522
      %v539 = vmul.f32 %v475, %v523
      %v540 = vmul.f32 %v478, %v524
      %v541 = vmul.f32 %v483, %v525
      %v542 = vmul.f32 %v486, %v526
      %v543 = vpack.c.bf16 %v528, %v527
      %v544 = vpack.c.bf16 %v530, %v529
      %v545 = vpack.c.bf16 %v532, %v531
      %v546 = vpack.c.bf16 %v534, %v533
      %v547 = vpack.c.bf16 %v536, %v535
      %v548 = vpack.c.bf16 %v538, %v537
      %v549 = vpack.c.bf16 %v540, %v539
      %v550 = vpack.c.bf16 %v542, %v541
      %v551 = vld [vmem:[%s94] sm:$0x1]
      %s552 = smul.u32 0, 16
      %v553 = vstv %s552
      %v554 = vsub.s32 %v551, %v553
      %v555 = vlaneseq
      %v556 = vshrl.u32 %v555, 7
      %v557 = vadd.s32 %v556, 8
      %v558 = vlaneseq
      %v559 = vshrl.u32 %v558, 7
      %v560 = vsub.s32 0, %v559
      %v561 = vrot.slane %v554, %v560
      %vm562 = vcmp.eq.s32.totalorder %v556, %v561
      %vm563 = vcmp.eq.s32.totalorder %v557, %v561
      %v564 = vsel %vm562, 1, 0
      %v565 = vsel %vm563, 1, 0
      %v566 = vcvt.s32.f32 %v564
      %v567 = vcvt.s32.f32 %v565
      %v568 = vpack.c.bf16 %v567, %v566
      %v569 = vld [vmem:[#allocation2] sm:$0xff]
      %v570 = vld [vmem:[#allocation2 + $0x8] sm:$0xff]
      %571 = vmatprep.subr.bf16.mxu0 0
      %572 = vmatpush1.bf16.msra.mxu0 %v550
      %573 = vmatprep.subr.bf16.mxu0 0
      %574 = vmatpush1.bf16.msra.mxu0 %v549
      %575 = vmatprep.subr.bf16.mxu0 0
      %576 = vmatpush1.bf16.msra.mxu0 %v548
      %577 = vmatprep.subr.bf16.mxu0 0
      %578 = vmatpush1.bf16.msra.mxu0 %v547
      %579 = vmatprep.subr.bf16.mxu0 0
      %580 = vmatpush1.bf16.msra.mxu0 %v546
      %581 = vmatprep.subr.bf16.mxu0 0
      %582 = vmatpush1.bf16.msra.mxu0 %v545
      %583 = vmatprep.subr.bf16.mxu0 0
      %584 = vmatpush1.bf16.msra.mxu0 %v544
      %585 = vmatprep.subr.bf16.mxu0 0
      %586 = vmatpush1.bf16.msra.mxu0 %v543
      %587 = vmatprep.subr.bf16.mxu0 0
      %588 = vmatpush2.bf16.msra.mxu0 0
      %589 = vmatprep.subr.bf16.mxu0 0
      %590 = vmatpush2.bf16.msra.mxu0 0
      %591 = vmatprep.subr.bf16.mxu0 0
      %592 = vmatpush2.bf16.msra.mxu0 0
      %593 = vmatprep.subr.bf16.mxu0 0
      %594 = vmatpush2.bf16.msra.mxu0 0
      %595 = vmatprep.subr.bf16.mxu0 0
      %596 = vmatpush2.bf16.msra.mxu0 0
      %597 = vmatprep.subr.bf16.mxu0 0
      %598 = vmatpush2.bf16.msra.mxu0 0
      %599 = vmatprep.subr.bf16.mxu0 0
      %600 = vmatpush2.bf16.msra.mxu0 0
      %601 = vmatprep.subr.bf16.mxu0 0
      %602 = vmatpush2.bf16.msra.mxu0 0
      %603 = vmatprep.mubr.bf16.mxu0 0
      %604 = vmatmul.mubr.bf16.gmra.mxu0 %v568
      %v605 = vpop.f32.mrf.mxu0
      %v606 = vadd.f32 0.0, %v605
      %v607 = vpop.f32.mrf.mxu0
      %v608 = vpop.f32.mrf.mxu0
      %v609 = vadd.f32 0.0, %v608
      %v610 = vpop.f32.mrf.mxu0
      %611 = vdwg.mxu0
      %v612 = vadd.f32 %v569, %v606
      %v613 = vadd.f32 %v570, %v609
      %614 = vst [vmem:[#allocation2] sm:$0xff] %v612
      %615 = vst [vmem:[#allocation2 + $0x8] sm:$0xff] %v613
    $region25: #{tpu_custom_call.1} parent=1 // pred_fallthru
      _
    // Predicated region
    $region26: #{tpu_custom_call.1} parent=1 // pred_check
      %p616 = pneg %p118
    $region27: #{tpu_custom_call.1} parent=1 // pred_check_branch
      %618 = sbr.rel (%p616) target = $region29
    $region28: #{tpu_custom_call.1} parent=1 // pred_region
      %v619 = vld [vmem:[#allocation2] sm:$0xff]
      %v620 = vld [vmem:[#allocation2 + $0x8] sm:$0xff]
      %vm621 = vcmp.eq.f32.partialorder %v619, 0.0
      %vm622 = vcmp.eq.f32.partialorder %v620, 0.0
      %v623 = vsel %vm621, 1e-12, %v619
      %v624 = vsel %vm622, 1e-12, %v620
      %626 = vset.pattern.permute.xlu0 16
      %627 = vperm.xlu0 %626, %v623
      %v628 = vpop.permute.xlu0 %627
      %631 = vset.pattern.permute.xlu0 16
      %632 = vperm.xlu0 %631, %v624
      %v633 = vpop.permute.xlu0 %632
      %v635 = vrcp.pop %v628
      %v636 = vmul.f32 %v619, %v635
      %v637 = vrcp.pop %v633
      %v638 = vmul.f32 %v620, %v637
      %639 = vset.pattern.permute.xlu0 17
      %640 = vperm.xlu0 %639, %v623
      %v641 = vpop.permute.xlu0 %640
      %643 = vset.pattern.permute.xlu0 17
      %644 = vperm.xlu0 %643, %v624
      %v645 = vpop.permute.xlu0 %644
      %v647 = vrcp.pop %v641
      %v648 = vmul.f32 %v619, %v647
      %v649 = vrcp.pop %v645
      %v650 = vmul.f32 %v620, %v649
      %vm651 = vcmask 64512
      %v652 = vsel %vm651, %v636, %v648
      %v653 = vsel %vm651, %v638, %v650
      %vm654 = vcmp.gt.f32.partialorder %v652, 0.0
      %vm655 = vcmp.gt.f32.partialorder %v653, 0.0
      %v656 = vmul.f32 %v652, 1.442695
      %v657 = vpow.pop %v656
      %v658 = vmul.f32 %v653, 1.442695
      %v659 = vpow.pop %v658
      %v660 = vsub.f32 %v657, 1.0
      %v661 = vsub.f32 %v659, 1.0
      %v662 = vsel %vm654, %v652, %v660
      %v663 = vsel %vm655, %v653, %v661
      %vm664 = vcmask 130048
      %v665 = vsel %vm664, %v662, 0.0
      %v666 = vsel %vm664, %v663, 0.0
      %v667 = vpack.c.bf16 %v666, %v665
      %v669 = vunpack.c.l.b16 %v667
      %v670 = vunpack.c.h.b16 %v667
      %v671 = vpack.c.b16 %v669, %v669
      %v672 = vpack.c.b16 %v670, %v670
      %675 = vst [vmem:[#allocation9] sm:$0xf] %v671
      %676 = vst [vmem:[#allocation9 + $0x4] sm:$0xf] %v672
    $region29: #{tpu_custom_call.1} parent=1 // pred_fallthru
      _
    // Predicated region
    $region30: #{tpu_custom_call.1} parent=1 // pred_check
      _
    $region31: #{tpu_custom_call.1} parent=1 // pred_check_branch
      %678 = sbr.rel (0) target = $region33
    $region32: #{tpu_custom_call.1} parent=1 // pred_region
      %s680 = ssub.s32 128, 128
      %681 = vsyncadd [#allocation8], %s680
      %s682 = sshll.u32 [#allocation9], 4
      %s683 = int_to_ptr.vmem [resolvable:$true] %s682
      %688 = dma.vmem_to_hbm [thread:$0]  %s683, 128, %s5, [#allocation8], 64, 64, 4
    $region33: #{tpu_custom_call.1} parent=1 // pred_fallthru
      _
    // Predicated region
    $region34: #{tpu_custom_call.1} parent=1 // pred_check
      _
    $region35: #{tpu_custom_call.1} parent=1 // pred_check_branch
      %690 = sbr.rel (0) target = $region37
    $region36: #{tpu_custom_call.1} parent=1 // pred_region
      %691 = dma.done [#allocation8], 128
    $region37: #{tpu_custom_call.1} parent=1 // pred_fallthru
      _
    %692 = vsyncpa [#allocation7], 1
    %693 = vsyncpa [#allocation8], 1

</llo_original>
